<compile_context>
chip_gen: v5e
topology: v5e:2x2
jax: 0.10.0
libtpu: 0.0.40
codegen_flags: <defaults>
</compile_context>

<pallas_src>
import functools

import jax
import jax.numpy as jnp
from jax.experimental import pallas as pl
from jax.experimental.pallas import tpu as pltpu

STD_X_COEF = 1.0
STD_Y_COEF = 0.5


def _lora_mean_kernel(agent_ref,     # scalar prefetch (consumed by index_maps only)
                      xt_ref,        # (In, TB)   = x^T batch tile
                      w0_ref,        # (Out, In)  natural PyTorch layout
                      b_ref,         # (Out, 1)
                      la_ref,        # (r, In)    lora_A[agent]   (agent dim squeezed)
                      lb_ref,        # (Out, r)   lora_B[agent]   (agent dim squeezed)
                      meant_ref,     # (Out, TB)  = mean^T batch tile
                      *, scaling):
    xt = xt_ref[...]                                                     # (In, TB)
    # Dense base:  W0 @ x^T                                              -> (Out, TB)
    base = jnp.dot(w0_ref[...], xt, preferred_element_type=jnp.float32)
    # Low-rank update: lora_B @ (scaling * (lora_A @ x^T)), never forming dW.
    z = jnp.dot(la_ref[...], xt, preferred_element_type=jnp.float32) * scaling   # (r, TB)
    delta = jnp.dot(lb_ref[...], z, preferred_element_type=jnp.float32)          # (Out, TB)
    meant_ref[...] = base + delta + b_ref[...]


def lora_diag_gaussian2(x, params, agent_id, *, lora_alpha=1.0, batch_tile=512):
    """Returns (action_mean [B, Out], action_std [B, Out]).

    Parameters are kept in their natural (PyTorch) layouts:
      w0 (Out, In), bias (Out,), lora_A (A, r, In), lora_B (A, Out, r),
      log_std (Out,), lora_A_std (A, r, 1), lora_B_std (A, Out, r).
    """
    x = x.astype(jnp.float32)
    batch, num_inputs = x.shape
    num_outputs = params["w0"].shape[0]
    rank = params["lora_A"].shape[1]
    scaling = float(lora_alpha) / float(rank)

    # --- batch tiling: batch becomes the lane axis of the transposed layout ---
    if batch <= batch_tile:
        tb, padded = batch, batch
    else:
        tb = batch_tile                         # multiple of 128
        padded = pl.cdiv(batch, tb) * tb
    x_t = x.T                                   # (In, B) — layout plumbing only
    if padded != batch:
        x_t = jnp.pad(x_t, ((0, 0), (0, padded - batch)))

    bias = params["bias"].reshape(num_outputs, 1)
    agent = jnp.asarray([agent_id], dtype=jnp.int32)

    kernel = functools.partial(_lora_mean_kernel, scaling=scaling)

    grid_spec = pltpu.PrefetchScalarGridSpec(
        num_scalar_prefetch=1,
        grid=(padded // tb,),
        in_specs=[
            # x^T: batch-tiled along the lane axis.
            pl.BlockSpec((num_inputs, tb), lambda i, aid: (0, i)),
            # Weights: constant block index -> stay resident across batch tiles.
            pl.BlockSpec((num_outputs, num_inputs), lambda i, aid: (0, 0)),
            pl.BlockSpec((num_outputs, 1), lambda i, aid: (0, 0)),
            pl.BlockSpec((pl.Squeezed(), rank, num_inputs),
                         lambda i, aid: (aid[0], 0, 0)),
            pl.BlockSpec((pl.Squeezed(), num_outputs, rank),
                         lambda i, aid: (aid[0], 0, 0)),
        ],
        out_specs=pl.BlockSpec((num_outputs, tb), lambda i, aid: (0, i)),
    )

    mean_t = pl.pallas_call(
        kernel,
        out_shape=jax.ShapeDtypeStruct((num_outputs, padded), jnp.float32),
        grid_spec=grid_spec,
        compiler_params=pltpu.CompilerParams(
            dimension_semantics=("parallel",)),   # megacore-shardable on v7x
    )(agent, x_t, params["w0"], bias, params["lora_A"], params["lora_B"])

    mean = mean_t[:, :batch].T                                  # (B, Out)

    # --- std: agent-dependent constant (no dependence on x) — computed once
    # in the wrapper instead of inside the kernel (perf review: removes a
    # 1-row MXU matmul, an EUP sigmoid, 3 DMAs and a masked (1, Out) store).
    d_std = scaling * (params["lora_B_std"][agent_id]
                       @ params["lora_A_std"][agent_id])[:, 0]  # (Out,)
    log_std = params["log_std"] + d_std
    std = jax.nn.sigmoid(log_std * (1.0 / STD_X_COEF)) * STD_Y_COEF
    std = jnp.broadcast_to(std[None, :], mean.shape)            # FixedNormal2 broadcast
    return mean, std


def _reference(x, params, agent_id, *, lora_alpha=1.0):
    """Pure-JAX reference mirroring the PyTorch forward."""
    rank = params["lora_A"].shape[1]
    scaling = float(lora_alpha) / float(rank)
    dW = (params["lora_B"][agent_id] @ params["lora_A"][agent_id]) * scaling
    W = params["w0"] + dW
    mean = x @ W.T + params["bias"]
    d_std = (params["lora_B_std"][agent_id]
             @ params["lora_A_std"][agent_id]).squeeze(-1) * scaling
    log_std = params["log_std"] + d_std
    std = jax.nn.sigmoid(log_std / STD_X_COEF) * STD_Y_COEF
    return mean, jnp.broadcast_to(std[None, :], mean.shape)


def init_params(key, num_inputs, num_outputs, rank, num_agents, gain=0.01):
    # Deterministic synthetic init in the natural PyTorch layouts (shapes match
    # the module; values are not a checkpoint). Bias is zero like
    # init_(..., constant_(x, 0)); log_std = ones * std_x_coef.
    k = jax.random.split(key, 6)
    return {
        "w0": gain * jax.random.normal(k[0], (num_outputs, num_inputs), jnp.float32),
        "bias": jnp.zeros((num_outputs,), jnp.float32),
        "lora_A": 0.1 * jax.random.normal(k[1], (num_agents, rank, num_inputs), jnp.float32),
        "lora_B": 0.1 * jax.random.normal(k[2], (num_agents, num_outputs, rank), jnp.float32),
        "log_std": jnp.ones((num_outputs,), jnp.float32) * STD_X_COEF,
        "lora_A_std": 0.1 * jax.random.normal(k[3], (num_agents, rank, 1), jnp.float32),
        "lora_B_std": 0.1 * jax.random.normal(k[4], (num_agents, num_outputs, rank), jnp.float32),
    }


if __name__ == "__main__":
    batch, num_inputs, num_outputs, rank, num_agents = 8, 32, 8, 4, 3
    lora_alpha = 1.0

    key = jax.random.PRNGKey(0)
    kx, kp = jax.random.split(key)
    x = jax.random.normal(kx, (batch, num_inputs), jnp.float32)
    params = init_params(kp, num_inputs, num_outputs, rank, num_agents)
    agent_id = 1

    mean, std = lora_diag_gaussian2(x, params, agent_id, lora_alpha=lora_alpha)
    jax.block_until_ready((mean, std))

    ref_mean, ref_std = _reference(x, params, agent_id, lora_alpha=lora_alpha)
    assert jnp.allclose(mean, ref_mean, atol=1e-5, rtol=1e-5), "mean mismatch"
    assert jnp.allclose(std, ref_std, atol=1e-6, rtol=1e-6), "std mismatch"

    print("KERNEL_OK")
</pallas_src>

<mosaic_0001>
module attributes {stable_mosaic.version = 11 : i64} {
  func.func @_lora_mean_kernel(%arg0: i32, %arg1: memref<1xi32, #tpu.memory_space<smem>>, %arg2: memref<32x8xf32, #tpu.memory_space<vmem>>, %arg3: memref<8x32xf32, #tpu.memory_space<vmem>>, %arg4: memref<8x1xf32, #tpu.memory_space<vmem>>, %arg5: memref<1x4x32xf32, #tpu.memory_space<vmem>>, %arg6: memref<1x8x4xf32, #tpu.memory_space<vmem>>, %arg7: memref<8x8xf32, #tpu.memory_space<vmem>>) attributes {dimension_semantics = [#tpu.dimension_semantics<parallel>], iteration_bounds = array<i64: 1>, scalar_prefetch = 1 : i64, scratch_operands = 0 : i64, tpu.core_type = #tpu.core_type<tc>, window_params = [{transform_indices = @transform_0, window_bounds = array<i64: 32, 8>}, {pipeline_mode = #tpu.pipeline_mode<synchronous>, transform_indices = @transform_1, window_bounds = array<i64: 8, 32>}, {pipeline_mode = #tpu.pipeline_mode<synchronous>, transform_indices = @transform_2, window_bounds = array<i64: 8, 1>}, {transform_indices = @transform_3, window_bounds = array<i64: 1, 4, 32>}, {transform_indices = @transform_4, window_bounds = array<i64: 1, 8, 4>}, {transform_indices = @transform_5, window_bounds = array<i64: 8, 8>}]} {
    %c0 = arith.constant 0 : index
    %c0_0 = arith.constant 0 : index
    %0 = vector.load %arg2[%c0, %c0_0] : memref<32x8xf32, #tpu.memory_space<vmem>>, vector<32x8xf32>
    %c0_1 = arith.constant 0 : index
    %c0_2 = arith.constant 0 : index
    %1 = vector.load %arg3[%c0_1, %c0_2] : memref<8x32xf32, #tpu.memory_space<vmem>>, vector<8x32xf32>
    %cst = arith.constant dense<0.000000e+00> : vector<8x8xf32>
    %2 = tpu.matmul %1, %0, %cst {dimension_numbers = #tpu.dot_dimension_numbers<[1], [0], [0], [1], [0, 0, 1, 1], [], []>} : vector<8x32xf32>, vector<32x8xf32>, vector<8x8xf32> -> vector<8x8xf32>
    %c0_3 = arith.constant 0 : index
    %c0_4 = arith.constant 0 : index
    %c0_5 = arith.constant 0 : index
    %3 = vector.load %arg5[%c0_3, %c0_4, %c0_5] : memref<1x4x32xf32, #tpu.memory_space<vmem>>, vector<1x4x32xf32>
    %4 = vector.shape_cast %3 : vector<1x4x32xf32> to vector<4x32xf32>
    %cst_6 = arith.constant dense<0.000000e+00> : vector<4x8xf32>
    %5 = tpu.matmul %4, %0, %cst_6 {dimension_numbers = #tpu.dot_dimension_numbers<[1], [0], [0], [1], [0, 0, 1, 1], [], []>} : vector<4x32xf32>, vector<32x8xf32>, vector<4x8xf32> -> vector<4x8xf32>
    %cst_7 = arith.constant 2.500000e-01 : f32
    %6 = vector.broadcast %cst_7 : f32 to vector<4x8xf32>
    %7 = arith.mulf %5, %6 : vector<4x8xf32>
    %c0_8 = arith.constant 0 : index
    %c0_9 = arith.constant 0 : index
    %c0_10 = arith.constant 0 : index
    %8 = vector.load %arg6[%c0_8, %c0_9, %c0_10] : memref<1x8x4xf32, #tpu.memory_space<vmem>>, vector<1x8x4xf32>
    %9 = vector.shape_cast %8 : vector<1x8x4xf32> to vector<8x4xf32>
    %cst_11 = arith.constant dense<0.000000e+00> : vector<8x8xf32>
    %10 = tpu.matmul %9, %7, %cst_11 {dimension_numbers = #tpu.dot_dimension_numbers<[1], [0], [0], [1], [0, 0, 1, 1], [], []>} : vector<8x4xf32>, vector<4x8xf32>, vector<8x8xf32> -> vector<8x8xf32>
    %11 = arith.addf %2, %10 : vector<8x8xf32>
    %c0_12 = arith.constant 0 : index
    %c0_13 = arith.constant 0 : index
    %12 = vector.load %arg4[%c0_12, %c0_13] : memref<8x1xf32, #tpu.memory_space<vmem>>, vector<8x1xf32>
    %13 = vector.broadcast %12 : vector<8x1xf32> to vector<8x8xf32>
    %14 = arith.addf %11, %13 : vector<8x8xf32>
    %c0_14 = arith.constant 0 : index
    %c0_15 = arith.constant 0 : index
    %15 = vector.load %arg7[%c0_14, %c0_15] : memref<8x8xf32, #tpu.memory_space<vmem>>, vector<8x8xf32>
    tpu.vector_store %arg7[%c0_14, %c0_15], %14 {strides = array<i32>} : memref<8x8xf32, #tpu.memory_space<vmem>>, vector<8x8xf32>,
    return
  }
  func.func @transform_0(%arg0: i32, %arg1: memref<1xi32, #tpu.memory_space<smem>>) -> (i32, i32) {
    %c0_i32 = arith.constant 0 : i32
    %c0_i32_0 = arith.constant 0 : i32
    return %c0_i32, %arg0 : i32, i32
  }
  func.func @transform_1(%arg0: i32, %arg1: memref<1xi32, #tpu.memory_space<smem>>) -> (i32, i32) {
    %c0_i32 = arith.constant 0 : i32
    %c0_i32_0 = arith.constant 0 : i32
    %c0_i32_1 = arith.constant 0 : i32
    return %c0_i32, %c0_i32_0 : i32, i32
  }
  func.func @transform_2(%arg0: i32, %arg1: memref<1xi32, #tpu.memory_space<smem>>) -> (i32, i32) {
    %c0_i32 = arith.constant 0 : i32
    %c0_i32_0 = arith.constant 0 : i32
    %c0_i32_1 = arith.constant 0 : i32
    return %c0_i32, %c0_i32_0 : i32, i32
  }
  func.func @transform_3(%arg0: i32, %arg1: memref<1xi32, #tpu.memory_space<smem>>) -> (i32, i32, i32) {
    %c0 = arith.constant 0 : index
    %0 = memref.load %arg1[%c0] : memref<1xi32, #tpu.memory_space<smem>>
    %c0_i32 = arith.constant 0 : i32
    %c0_i32_0 = arith.constant 0 : i32
    %c0_i32_1 = arith.constant 0 : i32
    return %0, %c0_i32, %c0_i32_0 : i32, i32, i32
  }
  func.func @transform_4(%arg0: i32, %arg1: memref<1xi32, #tpu.memory_space<smem>>) -> (i32, i32, i32) {
    %c0 = arith.constant 0 : index
    %0 = memref.load %arg1[%c0] : memref<1xi32, #tpu.memory_space<smem>>
    %c0_i32 = arith.constant 0 : i32
    %c0_i32_0 = arith.constant 0 : i32
    %c0_i32_1 = arith.constant 0 : i32
    return %0, %c0_i32, %c0_i32_0 : i32, i32, i32
  }
  func.func @transform_5(%arg0: i32, %arg1: memref<1xi32, #tpu.memory_space<smem>>) -> (i32, i32) {
    %c0_i32 = arith.constant 0 : i32
    %c0_i32_0 = arith.constant 0 : i32
    return %c0_i32, %arg0 : i32, i32
  }
}

</mosaic_0001>

<llo_original>
// kernel: tpu_custom_call.1
$region0: #{tpu_custom_call.1}
  #allocation0 [shape = 'u32[]', space=smem, size = 0x4, offset = 0x4, fixed_abs, tag = 'smem constant byte address 0x4 - core index']
  #allocation1 [shape = 'u32[72,128]{1,0:T(1,128)}', space=vmem, size = 0x9000, scoped, tag = 'internal scratch']
  #allocation2 [shape = 's32[1]{0}', space=sflag, size = 0x4, scoped, tag = 'scoped memory for tpu_custom_call.1']
  #allocation3 [shape = 's32[1]{0:T(128)S(6)}', space=smem, size = 0x200, scoped, tag = 'prefetched SMEM operand 0']
  %s0 = inlined_call_operand.<no memory space> [shape: s32[1], index: 0, kind: input, shape index: {}]
  %s1 = inlined_call_operand.vmem [shape: f32[32,8], index: 1, kind: input, shape index: {}]
  %s2 = inlined_call_operand.vmem [shape: f32[8,32], index: 2, kind: input, shape index: {}]
  %s3 = inlined_call_operand.vmem [shape: f32[8,1], index: 3, kind: input, shape index: {}]
  %s4 = inlined_call_operand.vmem [shape: f32[3,4,32], index: 4, kind: input, shape index: {}]
  %s5 = inlined_call_operand.vmem [shape: f32[3,8,4], index: 5, kind: input, shape index: {}]
  %s6 = inlined_call_operand.hbm [shape: f32[8,8], index: 6, kind: output, shape index: {}]
  %s7 = sld [smem:[#allocation0]]
  $region30: #{tpu_custom_call.1} parent=0
    _
  %s9 = ssub.s32 1, %s7
  %s10 = scalar_select 0, %s9, %s7
  %11 = sst [smem:[#allocation3]] %s0
  $region1: #{tpu_custom_call.1} parent=0
    #allocation4 [shape = 'u8[4096]{0}', space=vmem, size = 0x1000, scoped, tag = 'output window, operand 0, single buffered']
    #allocation5 [shape = 's32[1]{0}', space=sflag, size = 0x4, scoped, tag = 'scoped memory for tpu_custom_call.1']
    %12 = vsyncpa [#allocation5], 0
    // Predicated region
    $region2: #{tpu_custom_call.1} parent=1 // pred_check
      _
    $region3: #{tpu_custom_call.1} parent=1 // pred_check_branch
      %14 = sbr.rel (0) target = $region5
    $region4: #{tpu_custom_call.1} parent=1 // pred_region
      _
    $region5: #{tpu_custom_call.1} parent=1 // pred_fallthru
      _
    // Predicated region
    $region6: #{tpu_custom_call.1} parent=1 // pred_check
      _
    $region7: #{tpu_custom_call.1} parent=1 // pred_check_branch
      %16 = sbr.rel (0) target = $region9
    $region8: #{tpu_custom_call.1} parent=1 // pred_region
      _
    $region9: #{tpu_custom_call.1} parent=1 // pred_fallthru
      _
    // Predicated region
    $region10: #{tpu_custom_call.1} parent=1 // pred_check
      _
    $region11: #{tpu_custom_call.1} parent=1 // pred_check_branch
      %18 = sbr.rel (0) target = $region13
    $region12: #{tpu_custom_call.1} parent=1 // pred_region
      _
    $region13: #{tpu_custom_call.1} parent=1 // pred_fallthru
      _
    // Predicated region
    $region14: #{tpu_custom_call.1} parent=1 // pred_check
      _
    $region15: #{tpu_custom_call.1} parent=1 // pred_check_branch
      %20 = sbr.rel (0) target = $region17
    $region16: #{tpu_custom_call.1} parent=1 // pred_region
      %s21 = sld [smem:[#allocation3]]
      %p22 = scmp.lt.s32.totalorder %s21, 2
      %s23 = scalar_select %p22, %s21, 2
      %s24 = smul.addr %s23, 4
      %s25 = scalar_lea.vmem %s4, %s24
      %s26 = sld [smem:[#allocation3]]
    $region17: #{tpu_custom_call.1} parent=1 // pred_fallthru
      _
    // Predicated region
    $region18: #{tpu_custom_call.1} parent=1 // pred_check
      _
    $region19: #{tpu_custom_call.1} parent=1 // pred_check_branch
      %28 = sbr.rel (0) target = $region21
    $region20: #{tpu_custom_call.1} parent=1 // pred_region
      %s29 = sld [smem:[#allocation3]]
      %p30 = scmp.lt.s32.totalorder %s29, 2
      %s31 = scalar_select %p30, %s29, 2
      %s32 = smul.addr %s31, 8
      %s33 = scalar_lea.vmem %s5, %s32
      %s34 = sld [smem:[#allocation3]]
    $region21: #{tpu_custom_call.1} parent=1 // pred_fallthru
      _
    %s35 = sld [smem:[#allocation3]]
    %p36 = scmp.lt.s32.totalorder %s35, 2
    %s37 = scalar_select %p36, %s35, 2
    %s38 = smul.addr %s37, 4
    %s39 = scalar_lea.vmem %s4, %s38
    %s40 = sld [smem:[#allocation3]]
    %p41 = scmp.lt.s32.totalorder %s40, 2
    %s42 = scalar_select %p41, %s40, 2
    %s43 = smul.addr %s42, 8
    %s44 = scalar_lea.vmem %s5, %s43
    %s45 = sld [smem:[#allocation3]]
    %p46 = scmp.lt.s32.totalorder %s45, 2
    %s47 = scalar_select %p46, %s45, 2
    %s48 = smul.addr %s47, 4
    %s49 = scalar_lea.vmem %s4, %s48
    %s50 = sld [smem:[#allocation3]]
    %s51 = sld [smem:[#allocation3]]
    %p52 = scmp.lt.s32.totalorder %s51, 2
    %s53 = scalar_select %p52, %s51, 2
    %s54 = smul.addr %s53, 8
    %s55 = scalar_lea.vmem %s5, %s54
    %s56 = sld [smem:[#allocation3]]
    %v57 = vld [vmem:[%s1] sm:$0xff]
    %v58 = vld [vmem:[%s1 + $0x8] sm:$0xff]
    %v59 = vld [vmem:[%s1 + $0x10] sm:$0xff]
    %v60 = vld [vmem:[%s1 + $0x18] sm:$0xff]
    %v61 = vld [vmem:[%s2] sm:$0xff]
    %v62 = vld [vmem:[%s49] sm:$0xf]
    %vm63 = vcmask 261120
    %v65 = vsel %vm63, %v62, 0
    %67 = vmatpush.msra.mxu0 0.0
    %68 = vmatpush.msra.mxu0 0.0
    %69 = vmatpush.msra.mxu0 0.0
    %70 = vmatpush.msra.mxu0 0.0
    %71 = vmatpush.msra.mxu0 0.0
    %72 = vmatpush.msra.mxu0 0.0
    %73 = vmatpush.msra.mxu0 0.0
    %74 = vmatpush.msra.mxu0 0.0
    %75 = vmatpush.msra.mxu0 0.0
    %76 = vmatpush.msra.mxu0 0.0
    %77 = vmatpush.msra.mxu0 0.0
    %78 = vmatpush.msra.mxu0 0.0
    %79 = vmatpush.msra.mxu0 %v60
    %80 = vmatpush.msra.mxu0 %v59
    %81 = vmatpush.msra.mxu0 %v58
    %82 = vmatpush.msra.mxu0 %v57
    %83 = vmatmul.f32.gmra.mxu0 %v65
    %v84 = vpop.f32.mrf.mxu0
    %v85 = vadd.f32 0.0, %v84
    %86 = vdwg.mxu0
    %v87 = vmul.f32 %v85, 0.25
    %v88 = vld [vmem:[%s55] sm:$0xff]
    %vm89 = vcmask 31744
    %v91 = vsel %vm89, %v88, 0
    %vm93 = vcmask 1043456
    %v95 = vsel %vm93, %v87, 0
    %97 = vmatpush.msra.mxu0 0.0
    %98 = vmatpush.msra.mxu0 0.0
    %99 = vmatpush.msra.mxu0 0.0
    %100 = vmatpush.msra.mxu0 0.0
    %101 = vmatpush.msra.mxu0 0.0
    %102 = vmatpush.msra.mxu0 0.0
    %103 = vmatpush.msra.mxu0 0.0
    %104 = vmatpush.msra.mxu0 0.0
    %105 = vmatpush.msra.mxu0 0.0
    %106 = vmatpush.msra.mxu0 0.0
    %107 = vmatpush.msra.mxu0 0.0
    %108 = vmatpush.msra.mxu0 0.0
    %109 = vmatpush.msra.mxu0 0.0
    %110 = vmatpush.msra.mxu0 0.0
    %111 = vmatpush.msra.mxu0 0.0
    %112 = vmatpush.msra.mxu0 %v95
    %113 = vmatmul.f32.gmra.mxu0 %v91
    %v114 = vpop.f32.mrf.mxu0
    %v115 = vadd.f32 0.0, %v114
    %116 = vdwg.mxu0
    %v118 = vsel %vm63, %v61, 0
    %120 = vmatpush.msra.mxu0 0.0
    %121 = vmatpush.msra.mxu0 0.0
    %122 = vmatpush.msra.mxu0 0.0
    %123 = vmatpush.msra.mxu0 0.0
    %124 = vmatpush.msra.mxu0 0.0
    %125 = vmatpush.msra.mxu0 0.0
    %126 = vmatpush.msra.mxu0 0.0
    %127 = vmatpush.msra.mxu0 0.0
    %128 = vmatpush.msra.mxu0 0.0
    %129 = vmatpush.msra.mxu0 0.0
    %130 = vmatpush.msra.mxu0 0.0
    %131 = vmatpush.msra.mxu0 0.0
    %132 = vmatpush.msra.mxu0 %v60
    %133 = vmatpush.msra.mxu0 %v59
    %134 = vmatpush.msra.mxu0 %v58
    %135 = vmatpush.msra.mxu0 %v57
    %136 = vmatmul.f32.gmra.mxu0 %v118
    %v137 = vpop.f32.mrf.mxu0
    %v138 = vadd.f32 %v115, %v137
    %139 = vdwg.mxu0
    %v140 = vld [vmem:[%s3] sm:$0xff]
    %142 = vset.pattern.permute.xlu0 0
    %143 = vperm.xlu0 %142, %v140
    %v144 = vpop.permute.xlu0 %143
    %v146 = vadd.f32 %v138, %v144
    %vm147 = vcmask 64512
    %148 = vst.msk [vmem:[#allocation4] sm:$0xff] %vm147, %v146
    // Predicated region
    $region22: #{tpu_custom_call.1} parent=1 // pred_check
      _
    $region23: #{tpu_custom_call.1} parent=1 // pred_check_branch
      %150 = sbr.rel (0) target = $region25
    $region24: #{tpu_custom_call.1} parent=1 // pred_region
      %152 = vsyncadd [#allocation5], 0
      %s154 = sshll.u32 [#allocation4], 4
      %s155 = int_to_ptr.vmem [resolvable:$true] %s154
      %s156 = sshll.u32 %s6, 4
      %s157 = int_to_ptr.hbm [resolvable:$true] %s156
      %159 = dma.vmem_to_hbm [thread:$0]  %s155, 128, %s157, [#allocation5]
    $region25: #{tpu_custom_call.1} parent=1 // pred_fallthru
      _
    // Predicated region
    $region26: #{tpu_custom_call.1} parent=1 // pred_check
      _
    $region27: #{tpu_custom_call.1} parent=1 // pred_check_branch
      %161 = sbr.rel (0) target = $region29
    $region28: #{tpu_custom_call.1} parent=1 // pred_region
      %163 = dma.done [#allocation5], 128
    $region29: #{tpu_custom_call.1} parent=1 // pred_fallthru
      _
    %164 = vsyncpa [#allocation5], 1

</llo_original>
